<compile_context>
chip_gen: v7x
topology: tpu7x:2x2x1
jax: 0.10.0
libtpu: 0.0.40
codegen_flags: <defaults>
</compile_context>

<pallas_src>
import jax
import jax.numpy as jnp
from jax.experimental import pallas as pl
from jax.experimental.pallas import tpu as pltpu


def _object_index_kernel(e_ref, out_ref):
    # e_ref:   (TO, 1, D) tile of the embedding table.
    # out_ref: (TO, A, D) output block: out[o, a, :] = E[o, :]
    #          == the gather E[index // attributes_num] for this object tile.
    out_ref[...] = jnp.broadcast_to(e_ref[...], out_ref.shape)


def object_index_encoding(x, e_object_index, attributes_num, *, block_objects=None):
    """Pallas equivalent of ObjectIndexEncoding.forward.

    x:               (batch, seq[, ...])  -- only its shape is used
    e_object_index:  (object_max_num, E_dims) float table
    returns:         (batch, seq, E_dims)
    """
    B, S = x.shape[0], x.shape[1]
    O, D = e_object_index.shape
    A = int(attributes_num)
    # PyTorch .expand() only works when seq == object_max_num * attributes_num
    assert S == O * A, "seq must equal object_max_num * attributes_num"

    itemsize = jnp.dtype(e_object_index.dtype).itemsize
    obj_out_bytes = A * D * itemsize          # output bytes per object row group

    if block_objects is None:
        # Largest object tile with an output block <= ~4 MiB (well inside the
        # smallest default scoped VMEM once double-buffered).
        target_block_bytes = 4 * 1024 * 1024
        block_objects = max(1, min(O, target_block_bytes // max(obj_out_bytes, 1)))
    TO = int(block_objects)
    grid = (pl.cdiv(O, TO),)                  # ragged tail handled by Pallas

    out_block_bytes = TO * obj_out_bytes
    in_block_bytes = TO * D * itemsize
    # 2x double-buffered in/out blocks + headroom; clamp so the request is
    # honorable on every generation (v7x physical VMEM is 64 MiB).
    vmem_limit = int(
        min(max(2 * out_block_bytes + 2 * in_block_bytes + (2 << 20), 16 << 20), 48 << 20)
    )

    slab = pl.pallas_call(
        _object_index_kernel,
        out_shape=jax.ShapeDtypeStruct((O, A, D), e_object_index.dtype),
        grid_spec=pltpu.PrefetchScalarGridSpec(
            num_scalar_prefetch=0,
            grid=grid,
            in_specs=[pl.BlockSpec((TO, 1, D), lambda o: (o, 0, 0))],
            out_specs=pl.BlockSpec((TO, A, D), lambda o: (o, 0, 0)),
        ),
        compiler_params=pltpu.CompilerParams(
            dimension_semantics=("parallel",),
            vmem_limit_bytes=vmem_limit,
        ),
        cost_estimate=pl.CostEstimate(
            flops=0,
            transcendentals=0,
            bytes_accessed=int(O * A * D * itemsize + O * D * itemsize),
        ),
    )(e_object_index.reshape(O, 1, D))

    # (O, A, D) -> (S, D): contiguous, free reshape.
    # Batch expand like torch's .expand(): a broadcast, not a B x HBM rewrite.
    return jnp.broadcast_to(slab.reshape(S, D)[None], (B, S, D))


if __name__ == "__main__":
    # Small shapes consistent with the module: object_max_num=8,
    # attributes_num=8 (default) -> seq=64, E_dims=256 (default), batch=2.
    object_max_num = 8
    attributes_num = 8
    E_dims = 256
    batch = 2
    seq = object_max_num * attributes_num

    key = jax.random.PRNGKey(0)
    k_e, k_x = jax.random.split(key)

    # Deterministic "parameter" init (stands in for torch.randn in __init__).
    E_object_index = jax.random.normal(k_e, (object_max_num, E_dims), dtype=jnp.float32)
    # x: only (batch, seq) shape matters; contents are irrelevant to forward.
    x = jax.random.randint(k_x, (batch, seq), 0, 10, dtype=jnp.int32)

    out = object_index_encoding(x, E_object_index, attributes_num)
    out = jax.block_until_ready(out)

    # Pure-JAX reference for correctness.
    relative_index = jnp.arange(seq, dtype=jnp.int32) // attributes_num
    ref = jnp.broadcast_to(
        jnp.take(E_object_index, relative_index, axis=0)[None],
        (batch, seq, E_dims),
    )

    assert out.shape == (batch, seq, E_dims)
    assert out.dtype == jnp.float32
    assert jnp.allclose(out, ref), "Pallas output does not match reference"

    print("KERNEL_OK")
</pallas_src>

<mosaic_0001>
module attributes {stable_mosaic.version = 11 : i64} {
  func.func @_object_index_kernel(%arg0: i32, %arg1: memref<8x1x256xf32, #tpu.memory_space<vmem>>, %arg2: memref<8x8x256xf32, #tpu.memory_space<vmem>>) attributes {dimension_semantics = [#tpu.dimension_semantics<parallel>], iteration_bounds = array<i64: 1>, scalar_prefetch = 0 : i64, scratch_operands = 0 : i64, tpu.core_type = #tpu.core_type<tc>, window_params = [{transform_indices = @transform_0, window_bounds = array<i64: 8, 1, 256>}, {transform_indices = @transform_1, window_bounds = array<i64: 8, 8, 256>}]} {
    %c0 = arith.constant 0 : index
    %c0_0 = arith.constant 0 : index
    %c0_1 = arith.constant 0 : index
    %0 = vector.load %arg1[%c0, %c0_0, %c0_1] : memref<8x1x256xf32, #tpu.memory_space<vmem>>, vector<8x1x256xf32>
    %1 = vector.shape_cast %0 : vector<8x1x256xf32> to vector<8x1x256xf32>
    %2 = vector.broadcast %1 : vector<8x1x256xf32> to vector<8x8x256xf32>
    %c0_2 = arith.constant 0 : index
    %c0_3 = arith.constant 0 : index
    %c0_4 = arith.constant 0 : index
    %3 = vector.load %arg2[%c0_2, %c0_3, %c0_4] : memref<8x8x256xf32, #tpu.memory_space<vmem>>, vector<8x8x256xf32>
    tpu.vector_store %arg2[%c0_2, %c0_3, %c0_4], %2 {strides = array<i32>} : memref<8x8x256xf32, #tpu.memory_space<vmem>>, vector<8x8x256xf32>,
    return
  }
  func.func @transform_0(%arg0: i32) -> (i32, i32, i32) {
    %c0_i32 = arith.constant 0 : i32
    %c0_i32_0 = arith.constant 0 : i32
    %c0_i32_1 = arith.constant 0 : i32
    return %arg0, %c0_i32, %c0_i32_0 : i32, i32, i32
  }
  func.func @transform_1(%arg0: i32) -> (i32, i32, i32) {
    %c0_i32 = arith.constant 0 : i32
    %c0_i32_0 = arith.constant 0 : i32
    %c0_i32_1 = arith.constant 0 : i32
    return %arg0, %c0_i32, %c0_i32_0 : i32, i32, i32
  }
}

</mosaic_0001>

<llo_original>
// kernel: tpu_custom_call.1
$region0: #{tpu_custom_call.1}
  #allocation0 [shape = 'u32[]', space=smem, size = 0x4, offset = 0x4, fixed_abs, tag = 'smem constant byte address 0x4 - core index']
  #allocation1 [shape = 'u32[144,128]{1,0:T(1,128)}', space=vmem, size = 0x12000, scoped, tag = 'internal scratch']
  %s0 = inlined_call_operand.hbm [shape: f32[8,1,256], index: 0, kind: input, shape index: {}]
  %s1 = inlined_call_operand.hbm [shape: f32[8,8,256], index: 1, kind: output, shape index: {}]
  %s2 = sld [smem:[#allocation0]]
  $region18: #{tpu_custom_call.1} parent=0
    _
  %s4 = ssub.s32 1, %s2
  %s5 = scalar_select 0, %s4, %s2
  $region1: #{tpu_custom_call.1} parent=0
    #allocation2 [shape = 'u8[8192]{0}', space=vmem, size = 0x2000, scoped, tag = 'input window, operand 0, single buffered']
    #allocation3 [shape = 's32[1]{0}', space=sflag, size = 0x4, scoped, tag = 'scoped memory for tpu_custom_call.1']
    #allocation4 [shape = 's32[1]{0}', space=sflag, size = 0x4, scoped, tag = 'scoped memory for tpu_custom_call.1']
    #allocation5 [shape = 'u8[65536]{0}', space=vmem, size = 0x10000, scoped, tag = 'output window, operand 0, single buffered']
    %6 = vsyncpa [#allocation3], 0
    %7 = vsyncpa [#allocation4], 0
    // Predicated region
    $region2: #{tpu_custom_call.1} parent=1 // pred_check
      _
    $region3: #{tpu_custom_call.1} parent=1 // pred_check_branch
      %9 = sbr.rel (0) target = $region5
    $region4: #{tpu_custom_call.1} parent=1 // pred_region
      %s11 = ssub.s32 256, 256
      %12 = vsyncadd [#allocation3], %s11
      %s13 = sshll.u32 [#allocation2], 4
      %s14 = int_to_ptr.vmem [resolvable:$true] %s13
      %19 = dma.hbm_to_vmem [thread:$0]  %s0, 256, %s14, [#allocation3], 32, 32, 2
    $region5: #{tpu_custom_call.1} parent=1 // pred_fallthru
      _
    // Predicated region
    $region6: #{tpu_custom_call.1} parent=1 // pred_check
      _
    $region7: #{tpu_custom_call.1} parent=1 // pred_check_branch
      %21 = sbr.rel (0) target = $region9
    $region8: #{tpu_custom_call.1} parent=1 // pred_region
      %22 = dma.done [#allocation3], 256
    $region9: #{tpu_custom_call.1} parent=1 // pred_fallthru
      _
    %v23 = vld [vmem:[#allocation2] sm:$0x3]
    %v24 = vld [vmem:[#allocation2 + $0x2] sm:$0x3]
    %v25 = vld [vmem:[#allocation2 + $0x4] sm:$0x3]
    %v26 = vld [vmem:[#allocation2 + $0x6] sm:$0x3]
    %v27 = vld [vmem:[#allocation2 + $0x8] sm:$0x3]
    %v28 = vld [vmem:[#allocation2 + $0xa] sm:$0x3]
    %v29 = vld [vmem:[#allocation2 + $0xc] sm:$0x3]
    %v30 = vld [vmem:[#allocation2 + $0xe] sm:$0x3]
    %v39 = vlaneseq
    %v40 = vshrl.u32 %v39, 7
    %v41 = vsub.s32 0, %v40
    %v42 = vrot.slane %v23, %v41
    %v43 = vlaneseq
    %v44 = vshrl.u32 %v43, 7
    %v45 = vsub.s32 1, %v44
    %v46 = vrot.slane %v23, %v45
    %v47 = vlaneseq
    %v48 = vshrl.u32 %v47, 7
    %v49 = vsub.s32 0, %v48
    %v50 = vrot.slane %v24, %v49
    %v51 = vlaneseq
    %v52 = vshrl.u32 %v51, 7
    %v53 = vsub.s32 1, %v52
    %v54 = vrot.slane %v24, %v53
    %v55 = vlaneseq
    %v56 = vshrl.u32 %v55, 7
    %v57 = vsub.s32 0, %v56
    %v58 = vrot.slane %v25, %v57
    %v59 = vlaneseq
    %v60 = vshrl.u32 %v59, 7
    %v61 = vsub.s32 1, %v60
    %v62 = vrot.slane %v25, %v61
    %v63 = vlaneseq
    %v64 = vshrl.u32 %v63, 7
    %v65 = vsub.s32 0, %v64
    %v66 = vrot.slane %v26, %v65
    %v67 = vlaneseq
    %v68 = vshrl.u32 %v67, 7
    %v69 = vsub.s32 1, %v68
    %v70 = vrot.slane %v26, %v69
    %v71 = vlaneseq
    %v72 = vshrl.u32 %v71, 7
    %v73 = vsub.s32 0, %v72
    %v74 = vrot.slane %v27, %v73
    %v75 = vlaneseq
    %v76 = vshrl.u32 %v75, 7
    %v77 = vsub.s32 1, %v76
    %v78 = vrot.slane %v27, %v77
    %v79 = vlaneseq
    %v80 = vshrl.u32 %v79, 7
    %v81 = vsub.s32 0, %v80
    %v82 = vrot.slane %v28, %v81
    %v83 = vlaneseq
    %v84 = vshrl.u32 %v83, 7
    %v85 = vsub.s32 1, %v84
    %v86 = vrot.slane %v28, %v85
    %v87 = vlaneseq
    %v88 = vshrl.u32 %v87, 7
    %v89 = vsub.s32 0, %v88
    %v90 = vrot.slane %v29, %v89
    %v91 = vlaneseq
    %v92 = vshrl.u32 %v91, 7
    %v93 = vsub.s32 1, %v92
    %v94 = vrot.slane %v29, %v93
    %v95 = vlaneseq
    %v96 = vshrl.u32 %v95, 7
    %v97 = vsub.s32 0, %v96
    %v98 = vrot.slane %v30, %v97
    %v99 = vlaneseq
    %v100 = vshrl.u32 %v99, 7
    %v101 = vsub.s32 1, %v100
    %v102 = vrot.slane %v30, %v101
    %119 = vst [vmem:[#allocation5] sm:$0xff] %v42
    %120 = vst [vmem:[#allocation5 + $0x8] sm:$0xff] %v46
    %121 = vst [vmem:[#allocation5 + $0x10] sm:$0xff] %v50
    %122 = vst [vmem:[#allocation5 + $0x18] sm:$0xff] %v54
    %123 = vst [vmem:[#allocation5 + $0x20] sm:$0xff] %v58
    %124 = vst [vmem:[#allocation5 + $0x28] sm:$0xff] %v62
    %125 = vst [vmem:[#allocation5 + $0x30] sm:$0xff] %v66
    %126 = vst [vmem:[#allocation5 + $0x38] sm:$0xff] %v70
    %127 = vst [vmem:[#allocation5 + $0x40] sm:$0xff] %v74
    %128 = vst [vmem:[#allocation5 + $0x48] sm:$0xff] %v78
    %129 = vst [vmem:[#allocation5 + $0x50] sm:$0xff] %v82
    %130 = vst [vmem:[#allocation5 + $0x58] sm:$0xff] %v86
    %131 = vst [vmem:[#allocation5 + $0x60] sm:$0xff] %v90
    %132 = vst [vmem:[#allocation5 + $0x68] sm:$0xff] %v94
    %133 = vst [vmem:[#allocation5 + $0x70] sm:$0xff] %v98
    %134 = vst [vmem:[#allocation5 + $0x78] sm:$0xff] %v102
    // Predicated region
    $region10: #{tpu_custom_call.1} parent=1 // pred_check
      _
    $region11: #{tpu_custom_call.1} parent=1 // pred_check_branch
      %136 = sbr.rel (0) target = $region13
    $region12: #{tpu_custom_call.1} parent=1 // pred_region
      %s138 = ssub.s32 2048, 2048
      %139 = vsyncadd [#allocation4], %s138
      %s140 = sshll.u32 [#allocation5], 4
      %s141 = int_to_ptr.vmem [resolvable:$true] %s140
      %146 = dma.vmem_to_hbm [thread:$0]  %s141, 2048, %s1, [#allocation4], 256, 256, 16
    $region13: #{tpu_custom_call.1} parent=1 // pred_fallthru
      _
    // Predicated region
    $region14: #{tpu_custom_call.1} parent=1 // pred_check
      _
    $region15: #{tpu_custom_call.1} parent=1 // pred_check_branch
      %148 = sbr.rel (0) target = $region17
    $region16: #{tpu_custom_call.1} parent=1 // pred_region
      %149 = dma.done [#allocation4], 2048
    $region17: #{tpu_custom_call.1} parent=1 // pred_fallthru
      _
    %150 = vsyncpa [#allocation3], 1
    %151 = vsyncpa [#allocation4], 1

</llo_original>
